<compile_context>
chip_gen: v7x
topology: tpu7x:2x2x1
jax: 0.10.0
libtpu: 0.0.40
codegen_flags: <defaults>
</compile_context>

<pallas_src>
import functools

import jax
import jax.numpy as jnp
from jax.experimental import pallas as pl
from jax.experimental.pallas import tpu as pltpu


_DEFAULT_TARGET_BLOCK_BYTES = 3 * 1024 * 1024   # ~3 MiB f32 working tile / grid step
_VMEM_FLOOR = 16 * 1024 * 1024                  # never below the small default scoped VMEM
_VMEM_CAP = 40 * 1024 * 1024                    # headroom inside v7x's 64 MiB per-TC VMEM


def _ln_spatial_kernel(x_ref, w_ref, b_ref, o_ref, *, eps, inv_c):
    """One batch element x one lane-dense spatial tile.

    x_ref / o_ref : (C, T)  -- channels on sublanes, spatial on lanes
    w_ref / b_ref : (C, 1)  -- per-channel affine, resident across the grid
    """
    x = x_ref[...].astype(jnp.float32)

    # One-pass statistics over the channel (sublane) axis: a single sweep of
    # the tile yields sum(x) and sum(x*x); var = E[x^2] - mean^2 (biased,
    # matching torch's .pow(2).mean(1)).
    s1 = jnp.sum(x, axis=0, keepdims=True)          # (1, T)
    s2 = jnp.sum(x * x, axis=0, keepdims=True)      # (1, T)
    mean = s1 * inv_c
    # Clamp: cancellation can make E[x^2] - mean^2 slightly negative -> NaN in rsqrt.
    var = jnp.maximum(s2 * inv_c - mean * mean, 0.0)
    inv = jax.lax.rsqrt(var + eps)                  # (1, T)

    w = w_ref[...].astype(jnp.float32)              # (C, 1)
    b = b_ref[...].astype(jnp.float32)              # (C, 1)
    o_ref[...] = ((x - mean) * inv * w + b).astype(o_ref.dtype)


def _ln_batch_kernel(x_ref, w_ref, b_ref, o_ref, *, eps, inv_c):
    """Several full batch slabs per block (small-HW stages).

    x_ref / o_ref : (TB, C, HW)
    w_ref / b_ref : (1, C, 1)
    """
    x = x_ref[...].astype(jnp.float32)

    s1 = jnp.sum(x, axis=1, keepdims=True)          # (TB, 1, HW)
    s2 = jnp.sum(x * x, axis=1, keepdims=True)      # (TB, 1, HW)
    mean = s1 * inv_c
    var = jnp.maximum(s2 * inv_c - mean * mean, 0.0)
    inv = jax.lax.rsqrt(var + eps)

    w = w_ref[...].astype(jnp.float32)              # (1, C, 1)
    b = b_ref[...].astype(jnp.float32)              # (1, C, 1)
    o_ref[...] = ((x - mean) * inv * w + b).astype(o_ref.dtype)


def _vmem_limit_bytes(tile_elems, x_itemsize):
    """Exact budget: double-buffered in+out tiles (x.dtype) + f32 temps + slack."""
    io = 2 * 2 * tile_elems * x_itemsize            # 2 buffers each for in and out
    tmp = 4 * tile_elems * 4                        # f32 upcast, x*x, expression temps
    budget = int(1.2 * (io + tmp)) + (1 << 20)      # +20% slack, +1 MiB params/stats/misc
    cap = _VMEM_CAP
    try:
        phys = getattr(pltpu.get_tpu_info(), "vmem_capacity_bytes", None)
        if phys:
            cap = min(cap, int(phys) * 3 // 4)      # leave headroom for internal scratch
    except Exception:
        pass
    return int(max(_VMEM_FLOOR, min(cap, budget)))


def layer_norm_nchw(x, weight, bias, eps=1e-6,
                    target_block_bytes=_DEFAULT_TARGET_BLOCK_BYTES):
    """Channel-wise LayerNorm over NCHW input, matching the PyTorch module."""
    B, C, H, W = x.shape
    HW = H * W
    itemsize = jnp.dtype(x.dtype).itemsize
    per_batch_f32 = C * HW * 4                      # one full (C, HW) slab, f32 working size
    inv_c = 1.0 / C

    if per_batch_f32 <= target_block_bytes:
        # ---------------- batch-blocked path (small C*HW) ----------------
        tb = max(1, min(B, target_block_bytes // max(per_batch_f32, 1)))
        if B > 1:
            tb = min(tb, (B + 1) // 2)              # >= 2 grid steps so v7x cores both work
        n_b = pl.cdiv(B, tb)                        # last block padded; padded rows not written back

        x3 = x.reshape(B, C, HW)
        w3 = weight.reshape(1, C, 1)
        b3 = bias.reshape(1, C, 1)
        vmem = _vmem_limit_bytes(tb * C * HW, itemsize)

        out = pl.pallas_call(
            functools.partial(_ln_batch_kernel, eps=float(eps), inv_c=inv_c),
            out_shape=jax.ShapeDtypeStruct((B, C, HW), x.dtype),
            grid=(n_b,),
            in_specs=[
                pl.BlockSpec((tb, C, HW), lambda g: (g, 0, 0)),
                pl.BlockSpec((1, C, 1), lambda g: (0, 0, 0)),   # weight (resident)
                pl.BlockSpec((1, C, 1), lambda g: (0, 0, 0)),   # bias   (resident)
            ],
            out_specs=pl.BlockSpec((tb, C, HW), lambda g: (g, 0, 0)),
            compiler_params=pltpu.CompilerParams(
                dimension_semantics=("parallel",),
                vmem_limit_bytes=vmem,
            ),
        )(x3, w3, b3)
        return out.reshape(B, C, H, W)

    # ---------------- spatial-tiled path (large C*HW) ----------------
    # Tile scaled with C so each block is ~target_block_bytes; lane-dense
    # multiple of 128 (floor 128 only for pathologically large C, normally 512+).
    t_hw = (target_block_bytes // (4 * C)) // 128 * 128
    t_hw = max(128, min(4096, t_hw))
    if HW <= t_hw:
        t_hw = HW
    n_hw = pl.cdiv(HW, t_hw)                        # last block padded; padded lanes not written back

    x2 = x.reshape(B, C, HW)
    w2 = weight.reshape(C, 1)
    b2 = bias.reshape(C, 1)
    vmem = _vmem_limit_bytes(C * t_hw, itemsize)

    # Flat 1-D grid of B*n_hw so megacore (v7x) splits the parallel axis evenly.
    out = pl.pallas_call(
        functools.partial(_ln_spatial_kernel, eps=float(eps), inv_c=inv_c),
        out_shape=jax.ShapeDtypeStruct((B, C, HW), x.dtype),
        grid=(B * n_hw,),
        in_specs=[
            pl.BlockSpec((pl.Squeezed(), C, t_hw),
                         lambda g: (g // n_hw, 0, g % n_hw)),
            pl.BlockSpec((C, 1), lambda g: (0, 0)),             # weight (resident)
            pl.BlockSpec((C, 1), lambda g: (0, 0)),             # bias   (resident)
        ],
        out_specs=pl.BlockSpec((pl.Squeezed(), C, t_hw),
                               lambda g: (g // n_hw, 0, g % n_hw)),
        compiler_params=pltpu.CompilerParams(
            dimension_semantics=("parallel",),
            vmem_limit_bytes=vmem,
        ),
    )(x2, w2, b2)
    return out.reshape(B, C, H, W)


def _reference(x, weight, bias, eps=1e-6):
    # Pure-JAX reference mirroring the torch forward exactly.
    u = jnp.mean(x, axis=1, keepdims=True)
    s = jnp.mean((x - u) ** 2, axis=1, keepdims=True)
    xn = (x - u) / jnp.sqrt(s + eps)
    return weight[:, None, None] * xn + bias[:, None, None]


if __name__ == "__main__":
    key = jax.random.PRNGKey(0)

    def run_case(shape, **kw):
        B, C, H, W = shape
        kx, kwt, kb = jax.random.split(jax.random.fold_in(key, C * H * W + B), 3)
        x = jax.random.normal(kx, shape, dtype=jnp.float32)
        # Module init is ones/zeros; use deterministic random values so the
        # affine part of the kernel is actually exercised.
        weight = 1.0 + 0.1 * jax.random.normal(kwt, (C,), dtype=jnp.float32)
        bias = 0.1 * jax.random.normal(kb, (C,), dtype=jnp.float32)

        out = jax.block_until_ready(layer_norm_nchw(x, weight, bias, eps=1e-6, **kw))
        ref = _reference(x, weight, bias, eps=1e-6)
        assert out.shape == shape
        assert jnp.allclose(out, ref, atol=1e-5, rtol=1e-5), f"mismatch vs reference for {shape}"

    # Small default case -> batch-blocked path (HW=256, tiny per-batch slab).
    run_case((2, 4, 16, 16))
    # Spatial-tiled path with a multi-step flat grid (forced via small block target).
    run_case((2, 8, 32, 64), target_block_bytes=32 * 1024)
    # Spatial path with a padded last spatial block (HW=784 not a multiple of t_hw).
    run_case((2, 8, 28, 28), target_block_bytes=8 * 1024)

    print("KERNEL_OK")
</pallas_src>

<mosaic_0001>
module attributes {stable_mosaic.version = 11 : i64} {
  func.func @_ln_batch_kernel(%arg0: i32, %arg1: memref<1x4x256xf32, #tpu.memory_space<vmem>>, %arg2: memref<1x4x1xf32, #tpu.memory_space<vmem>>, %arg3: memref<1x4x1xf32, #tpu.memory_space<vmem>>, %arg4: memref<1x4x256xf32, #tpu.memory_space<vmem>>) attributes {dimension_semantics = [#tpu.dimension_semantics<parallel>], iteration_bounds = array<i64: 2>, scalar_prefetch = 0 : i64, scratch_operands = 0 : i64, tpu.core_type = #tpu.core_type<tc>, window_params = [{transform_indices = @transform_0, window_bounds = array<i64: 1, 4, 256>}, {pipeline_mode = #tpu.pipeline_mode<synchronous>, transform_indices = @transform_1, window_bounds = array<i64: 1, 4, 1>}, {pipeline_mode = #tpu.pipeline_mode<synchronous>, transform_indices = @transform_2, window_bounds = array<i64: 1, 4, 1>}, {transform_indices = @transform_3, window_bounds = array<i64: 1, 4, 256>}]} {
    %c0 = arith.constant 0 : index
    %c0_0 = arith.constant 0 : index
    %c0_1 = arith.constant 0 : index
    %0 = vector.load %arg1[%c0, %c0_0, %c0_1] : memref<1x4x256xf32, #tpu.memory_space<vmem>>, vector<1x4x256xf32>
    %cst = arith.constant dense<0.000000e+00> : vector<1x256xf32>
    %1 = vector.multi_reduction <add>, %0, %cst [1] : vector<1x4x256xf32> to vector<1x256xf32>
    %2 = vector.shape_cast %1 : vector<1x256xf32> to vector<1x1x256xf32>
    %3 = arith.mulf %0, %0 : vector<1x4x256xf32>
    %cst_2 = arith.constant dense<0.000000e+00> : vector<1x256xf32>
    %4 = vector.multi_reduction <add>, %3, %cst_2 [1] : vector<1x4x256xf32> to vector<1x256xf32>
    %5 = vector.shape_cast %4 : vector<1x256xf32> to vector<1x1x256xf32>
    %cst_3 = arith.constant 2.500000e-01 : f32
    %6 = vector.broadcast %cst_3 : f32 to vector<1x1x256xf32>
    %7 = arith.mulf %2, %6 : vector<1x1x256xf32>
    %cst_4 = arith.constant 2.500000e-01 : f32
    %8 = vector.broadcast %cst_4 : f32 to vector<1x1x256xf32>
    %9 = arith.mulf %5, %8 : vector<1x1x256xf32>
    %10 = arith.mulf %7, %7 : vector<1x1x256xf32>
    %11 = arith.subf %9, %10 : vector<1x1x256xf32>
    %cst_5 = arith.constant 0.000000e+00 : f32
    %12 = vector.broadcast %cst_5 : f32 to vector<1x1x256xf32>
    %13 = arith.maximumf %11, %12 : vector<1x1x256xf32>
    %cst_6 = arith.constant 9.99999997E-7 : f32
    %14 = vector.broadcast %cst_6 : f32 to vector<1x1x256xf32>
    %15 = arith.addf %13, %14 : vector<1x1x256xf32>
    %16 = math.rsqrt %15 : vector<1x1x256xf32>
    %c0_7 = arith.constant 0 : index
    %c0_8 = arith.constant 0 : index
    %c0_9 = arith.constant 0 : index
    %17 = vector.load %arg2[%c0_7, %c0_8, %c0_9] : memref<1x4x1xf32, #tpu.memory_space<vmem>>, vector<1x4x1xf32>
    %c0_10 = arith.constant 0 : index
    %c0_11 = arith.constant 0 : index
    %c0_12 = arith.constant 0 : index
    %18 = vector.load %arg3[%c0_10, %c0_11, %c0_12] : memref<1x4x1xf32, #tpu.memory_space<vmem>>, vector<1x4x1xf32>
    %19 = vector.broadcast %7 : vector<1x1x256xf32> to vector<1x4x256xf32>
    %20 = arith.subf %0, %19 : vector<1x4x256xf32>
    %21 = vector.broadcast %16 : vector<1x1x256xf32> to vector<1x4x256xf32>
    %22 = arith.mulf %20, %21 : vector<1x4x256xf32>
    %23 = vector.broadcast %17 : vector<1x4x1xf32> to vector<1x4x256xf32>
    %24 = arith.mulf %22, %23 : vector<1x4x256xf32>
    %25 = vector.broadcast %18 : vector<1x4x1xf32> to vector<1x4x256xf32>
    %26 = arith.addf %24, %25 : vector<1x4x256xf32>
    %c0_13 = arith.constant 0 : index
    %c0_14 = arith.constant 0 : index
    %c0_15 = arith.constant 0 : index
    %27 = vector.load %arg4[%c0_13, %c0_14, %c0_15] : memref<1x4x256xf32, #tpu.memory_space<vmem>>, vector<1x4x256xf32>
    tpu.vector_store %arg4[%c0_13, %c0_14, %c0_15], %26 {strides = array<i32>} : memref<1x4x256xf32, #tpu.memory_space<vmem>>, vector<1x4x256xf32>,
    return
  }
  func.func @transform_0(%arg0: i32) -> (i32, i32, i32) {
    %c0_i32 = arith.constant 0 : i32
    %c0_i32_0 = arith.constant 0 : i32
    %c0_i32_1 = arith.constant 0 : i32
    return %arg0, %c0_i32, %c0_i32_0 : i32, i32, i32
  }
  func.func @transform_1(%arg0: i32) -> (i32, i32, i32) {
    %c0_i32 = arith.constant 0 : i32
    %c0_i32_0 = arith.constant 0 : i32
    %c0_i32_1 = arith.constant 0 : i32
    %c0_i32_2 = arith.constant 0 : i32
    return %c0_i32, %c0_i32_0, %c0_i32_1 : i32, i32, i32
  }
  func.func @transform_2(%arg0: i32) -> (i32, i32, i32) {
    %c0_i32 = arith.constant 0 : i32
    %c0_i32_0 = arith.constant 0 : i32
    %c0_i32_1 = arith.constant 0 : i32
    %c0_i32_2 = arith.constant 0 : i32
    return %c0_i32, %c0_i32_0, %c0_i32_1 : i32, i32, i32
  }
  func.func @transform_3(%arg0: i32) -> (i32, i32, i32) {
    %c0_i32 = arith.constant 0 : i32
    %c0_i32_0 = arith.constant 0 : i32
    %c0_i32_1 = arith.constant 0 : i32
    return %arg0, %c0_i32, %c0_i32_0 : i32, i32, i32
  }
}

</mosaic_0001>

<llo_original>
// kernel: tpu_custom_call.1
$region0: #{tpu_custom_call.1}
  #allocation0 [shape = 'u32[]', space=smem, size = 0x4, offset = 0x4, fixed_abs, tag = 'smem constant byte address 0x4 - core index']
  #allocation1 [shape = 'u32[144,128]{1,0:T(1,128)}', space=vmem, size = 0x12000, scoped, tag = 'internal scratch']
  %s0 = inlined_call_operand.hbm [shape: f32[2,4,256], index: 0, kind: input, shape index: {}]
  %s1 = inlined_call_operand.vmem [shape: f32[1,4,1], index: 1, kind: input, shape index: {}]
  %s2 = inlined_call_operand.vmem [shape: f32[1,4,1], index: 2, kind: input, shape index: {}]
  %s3 = inlined_call_operand.hbm [shape: f32[2,4,256], index: 3, kind: output, shape index: {}]
  %s4 = sld [smem:[#allocation0]]
  $region49: #{tpu_custom_call.1} parent=0
    _
  %s6 = ssub.s32 1, %s4
  %s7 = scalar_select 0, %s6, %s4
  $region1: #{tpu_custom_call.1} parent=0
    #allocation2 [shape = 'u8[8192]{0}', space=vmem, size = 0x2000, scoped, tag = 'input window, operand 0']
    #allocation3 [shape = 's32[2]{0}', space=sflag, size = 0x8, scoped, tag = 'scoped memory for tpu_custom_call.1']
    #allocation4 [shape = 's32[2]{0}', space=sflag, size = 0x8, scoped, tag = 'scoped memory for tpu_custom_call.1']
    #allocation5 [shape = 'u8[8192]{0}', space=vmem, size = 0x2000, scoped, tag = 'output window, operand 0']
    %8 = vsyncpa [#allocation3], 0
    %s9 = scalar_lea.sflag [#allocation3], 1
    %10 = vsyncpa %s9, 0
    %11 = vsyncpa [#allocation4], 0
    %s12 = scalar_lea.sflag [#allocation4], 1
    %13 = vsyncpa %s12, 0
    loop: start=0, step=1, limit=4
    $region2: #{tpu_custom_call.1} parent=1 // loop_pre_header
      _
    $region3: #{tpu_custom_call.1} parent=1 // loop_header
      %s15 = sphi 0, %s19
      %p16 = scmp.ge.s32.totalorder %s15, 4
      %s25 = sphi 0, %s27
      %s28 = sphi 0, %s25
      %s29 = sphi 0, %s28
      %s45 = sphi 0, %s29
      %s49 = sphi 0, %s49
      %s51 = sphi 0, %s49
      %s52 = sphi 0, %s51
      %s66 = sphi 0, %s52
      %s70 = sphi 0, %s70
      %s72 = sphi 0, %s70
      %s73 = sphi 0, %s72
      %s87 = sphi 0, %s73
      %s93 = sphi 0, %s95
      %s96 = sphi 0, %s93
      %s97 = sphi 0, %s96
      %s113 = sphi 0, %s97
    $region4: #{tpu_custom_call.1} parent=1 // loop_header_branch
      %18 = sbr.rel (%p16) target = $region8
    $region5: #{tpu_custom_call.1} parent=1 // loop_body
      %s20 = ssub.s32 %s15, 1
      %s21 = ssub.s32 %s15, 2
      %s22 = sadd.s32 %s15, 1
      %s23 = ssub.s32 %s15, %s22
      %p24 = scmp.eq.s32.totalorder %s23, 0
      %s26 = sadd.s32 %s25, 1
      %s27 = scalar_select %p24, %s25, %s26
      %p30 = pneg %p24
      %p31 = scmp.eq.s32.totalorder %s15, 1
      %p32 = por %p30, %p31
      %p33 = scmp.ne.s32.totalorder %s25, %s28
      %p34 = scmp.eq.s32.totalorder %s15, 0
      %p35 = por %p33, %p34
      %p36 = scmp.ne.s32.totalorder %s25, %s28
      %p37 = scmp.eq.s32.totalorder %s20, 1
      %p38 = por %p36, %p37
      %p39 = scmp.ne.s32.totalorder %s28, %s29
      %p40 = scmp.eq.s32.totalorder %s20, 0
      %p41 = por %p39, %p40
      %p42 = scmp.ne.s32.totalorder %s28, %s29
      %p43 = scmp.eq.s32.totalorder %s21, 1
      %p44 = por %p42, %p43
      %p46 = scmp.ne.s32.totalorder %s29, %s45
      %p47 = scmp.eq.s32.totalorder %s21, 0
      %p48 = por %p46, %p47
      %s50 = sadd.s32 %s49, 1
      %p53 = scmp.eq.s32.totalorder %s15, 1
      %p54 = scmp.ne.s32.totalorder %s49, %s51
      %p55 = scmp.eq.s32.totalorder %s15, 0
      %p56 = por %p54, %p55
      %p57 = scmp.ne.s32.totalorder %s49, %s51
      %p58 = scmp.eq.s32.totalorder %s20, 1
      %p59 = por %p57, %p58
      %p60 = scmp.ne.s32.totalorder %s51, %s52
      %p61 = scmp.eq.s32.totalorder %s20, 0
      %p62 = por %p60, %p61
      %p63 = scmp.ne.s32.totalorder %s51, %s52
      %p64 = scmp.eq.s32.totalorder %s21, 1
      %p65 = por %p63, %p64
      %p67 = scmp.ne.s32.totalorder %s52, %s66
      %p68 = scmp.eq.s32.totalorder %s21, 0
      %p69 = por %p67, %p68
      %s71 = sadd.s32 %s70, 1
      %p74 = scmp.eq.s32.totalorder %s15, 1
      %p75 = scmp.ne.s32.totalorder %s70, %s72
      %p76 = scmp.eq.s32.totalorder %s15, 0
      %p77 = por %p75, %p76
      %p78 = scmp.ne.s32.totalorder %s70, %s72
      %p79 = scmp.eq.s32.totalorder %s20, 1
      %p80 = por %p78, %p79
      %p81 = scmp.ne.s32.totalorder %s72, %s73
      %p82 = scmp.eq.s32.totalorder %s20, 0
      %p83 = por %p81, %p82
      %p84 = scmp.ne.s32.totalorder %s72, %s73
      %p85 = scmp.eq.s32.totalorder %s21, 1
      %p86 = por %p84, %p85
      %p88 = scmp.ne.s32.totalorder %s73, %s87
      %p89 = scmp.eq.s32.totalorder %s21, 0
      %p90 = por %p88, %p89
      %s91 = ssub.s32 %s15, %s22
      %p92 = scmp.eq.s32.totalorder %s91, 0
      %s94 = sadd.s32 %s93, 1
      %s95 = scalar_select %p92, %s93, %s94
      %p98 = pneg %p92
      %p99 = scmp.eq.s32.totalorder %s15, 1
      %p100 = por %p98, %p99
      %p101 = scmp.ne.s32.totalorder %s93, %s96
      %p102 = scmp.eq.s32.totalorder %s15, 0
      %p103 = por %p101, %p102
      %p104 = scmp.ne.s32.totalorder %s93, %s96
      %p105 = scmp.eq.s32.totalorder %s20, 1
      %p106 = por %p104, %p105
      %p107 = scmp.ne.s32.totalorder %s96, %s97
      %p108 = scmp.eq.s32.totalorder %s20, 0
      %p109 = por %p107, %p108
      %p110 = scmp.ne.s32.totalorder %s96, %s97
      %p111 = scmp.eq.s32.totalorder %s21, 1
      %p112 = por %p110, %p111
      %p114 = scmp.ne.s32.totalorder %s97, %s113
      %p115 = scmp.eq.s32.totalorder %s21, 0
      %p116 = por %p114, %p115
      %p117 = scmp.le.s32.totalorder 1, %s15
      %p118 = scmp.lt.s32.totalorder %s15, 3
      %p119 = pnand %p117, %p118
      %p120 = pneg %p119
      // Predicated region
      $region9: #{tpu_custom_call.1} parent=5 // pred_check
        _
      $region10: #{tpu_custom_call.1} parent=5 // pred_check_branch
        %122 = sbr.rel (%p119) target = $region12
      $region11: #{tpu_custom_call.1} parent=5 // pred_region
        %s123 = ssub.s32 %s15, 1
        // Predicated region
        $region13: #{tpu_custom_call.1} parent=11 // pred_check
          %p124 = pneg %p62
        $region14: #{tpu_custom_call.1} parent=11 // pred_check_branch
          %126 = sbr.rel (%p124) target = $region16
        $region15: #{tpu_custom_call.1} parent=11 // pred_region
          _
        $region16: #{tpu_custom_call.1} parent=11 // pred_fallthru
          _
        // Predicated region
        $region17: #{tpu_custom_call.1} parent=11 // pred_check
          %p127 = pneg %p83
        $region18: #{tpu_custom_call.1} parent=11 // pred_check_branch
          %129 = sbr.rel (%p127) target = $region20
        $region19: #{tpu_custom_call.1} parent=11 // pred_region
          _
        $region20: #{tpu_custom_call.1} parent=11 // pred_fallthru
          _
      $region12: #{tpu_custom_call.1} parent=5 // pred_fallthru
        _
      %p130 = scmp.lt.s32.totalorder %s15, 2
      // Predicated region
      $region21: #{tpu_custom_call.1} parent=5 // pred_check
        %p131 = pneg %p130
      $region22: #{tpu_custom_call.1} parent=5 // pred_check_branch
        %133 = sbr.rel (%p131) target = $region24
      $region23: #{tpu_custom_call.1} parent=5 // pred_region
        // Predicated region
        $region25: #{tpu_custom_call.1} parent=23 // pred_check
          %p134 = pneg %p35
        $region26: #{tpu_custom_call.1} parent=23 // pred_check_branch
          %136 = sbr.rel (%p134) target = $region28
        $region27: #{tpu_custom_call.1} parent=23 // pred_region
          %s137 = sand.u32 %s25, 1
          %s138 = scalar_lea.sflag [#allocation3], %s137
          %s139 = sand.u32 %s25, 1
          %s140 = smul.addr %s139, 8
          %s141 = scalar_lea.vmem [#allocation2], %s140
          %s143 = ssub.s32 128, 128
          %144 = vsyncadd %s138, %s143
          %s145 = smul.addr %s15, 2
          %s146 = smul.addr %s145, 64
          %s147 = scalar_lea.hbm %s0, %s146
          %s149 = sshll.u32 %s141, 4
          %s150 = int_to_ptr.vmem [resolvable:$true] %s149
          %152 = dma.hbm_to_vmem [thread:$0]  %s147, 128, %s150, %s138
        $region28: #{tpu_custom_call.1} parent=23 // pred_fallthru
          _
      $region24: #{tpu_custom_call.1} parent=5 // pred_fallthru
        _
      %p153 = scmp.le.s32.totalorder 1, %s15
      %p154 = scmp.lt.s32.totalorder %s15, 3
      %p155 = pnand %p153, %p154
      %p156 = pneg %p155
      // Predicated region
      $region29: #{tpu_custom_call.1} parent=5 // pred_check
        _
      $region30: #{tpu_custom_call.1} parent=5 // pred_check_branch
        %158 = sbr.rel (%p155) target = $region32
      $region31: #{tpu_custom_call.1} parent=5 // pred_region
        %s159 = ssub.s32 %s15, 1
        %s160 = sand.u32 %s28, 1
        %s161 = scalar_lea.sflag [#allocation3], %s160
        %s162 = sand.u32 %s28, 1
        %s163 = smul.addr %s162, 8
        %s164 = scalar_lea.vmem [#allocation2], %s163
        // Predicated region
        $region33: #{tpu_custom_call.1} parent=31 // pred_check
          %p165 = pneg %p41
        $region34: #{tpu_custom_call.1} parent=31 // pred_check_branch
          %167 = sbr.rel (%p165) target = $region36
        $region35: #{tpu_custom_call.1} parent=31 // pred_region
          %168 = dma.done %s161, 128
        $region36: #{tpu_custom_call.1} parent=31 // pred_fallthru
          _
        %s169 = sand.u32 %s28, 1
        %s170 = scalar_lea.sflag [#allocation3], %s169
        %s171 = sand.u32 %s28, 1
        %s172 = smul.addr %s171, 8
        %s173 = scalar_lea.vmem [#allocation2], %s172
        %p174 = pneg %p41
        %p175 = pneg %p38
        %p176 = pneg %p62
        %p177 = pneg %p59
        %p178 = pneg %p83
        %p179 = pneg %p80
        %p180 = pneg %p109
        %p181 = pneg %p106
        %s182 = sand.u32 %s96, 1
        %s183 = scalar_lea.sflag [#allocation4], %s182
        %s184 = sand.u32 %s96, 1
        %s185 = smul.addr %s184, 8
        %s186 = scalar_lea.vmem [#allocation5], %s185
        %v187 = vld [vmem:[%s164] sm:$0xff]
        %v189 = vcombine.high %v187, %v187
        %vm191 = vcmask 1043456
        %v192 = vsel %vm191, %v187, 0.0
        %v193 = vrot.slane %v192, 4
        %v194 = vadd.f32 %v192, %v193
        %v195 = vrot.slane %v194, 2
        %v196 = vadd.f32 %v194, %v195
        %v197 = vrot.slane %v196, 1
        %v198 = vadd.f32 %v196, %v197
        %v199 = vsel %vm191, %v189, 0.0
        %v200 = vrot.slane %v199, 4
        %v201 = vadd.f32 %v199, %v200
        %v202 = vrot.slane %v201, 2
        %v203 = vadd.f32 %v201, %v202
        %v204 = vrot.slane %v203, 1
        %v205 = vadd.f32 %v203, %v204
        %v206 = vmul.f32 %v187, %v187
        %v208 = vcombine.high %v206, %v206
        %v210 = vsel %vm191, %v206, 0.0
        %v211 = vrot.slane %v210, 4
        %v212 = vadd.f32 %v210, %v211
        %v213 = vrot.slane %v212, 2
        %v214 = vadd.f32 %v212, %v213
        %v215 = vrot.slane %v214, 1
        %v216 = vadd.f32 %v214, %v215
        %v217 = vsel %vm191, %v208, 0.0
        %v218 = vrot.slane %v217, 4
        %v219 = vadd.f32 %v217, %v218
        %v220 = vrot.slane %v219, 2
        %v221 = vadd.f32 %v219, %v220
        %v222 = vrot.slane %v221, 1
        %v223 = vadd.f32 %v221, %v222
        %v224 = vmul.f32 %v198, 0.25
        %v225 = vmul.f32 %v205, 0.25
        %v226 = vmul.f32 %v216, 0.25
        %v227 = vmul.f32 %v223, 0.25
        %v228 = vmul.f32 %v224, %v224
        %v229 = vmul.f32 %v225, %v225
        %v230 = vsub.f32 %v226, %v228
        %v231 = vsub.f32 %v227, %v229
        %v232 = vmax.f32 %v230, 0.0
        %v233 = vmax.f32 %v231, 0.0
        %v234 = vadd.f32 %v232, 1e-06
        %v235 = vadd.f32 %v233, 1e-06
        %v236 = vrsqrt.pop %v234
        %v237 = vrsqrt.pop %v235
        %v238 = vld [vmem:[%s1] sm:$0xf]
        %v239 = vld [vmem:[%s2] sm:$0xf]
        %v242 = vcombine.low %v224, %v225
        %v244 = vsub.f32 %v187, %v242
        %v247 = vcombine.low %v236, %v237
        %v249 = vmul.f32 %v244, %v247
        %251 = vset.pattern.permute.xlu0 0
        %252 = vperm.xlu0 %251, %v238
        %v253 = vpop.permute.xlu0 %252
        %v255 = vunpack.c.l.s4 839922192
        %v256 = vunpack.c.0.s8 %v255
        %v257 = vlaneseq
        %v258 = vshrl.u32 %v257, 7
        %v259 = vsub.s32 %v256, %v258
        %v260 = vrot.slane %v253, %v259
        %v262 = vmul.f32 %v249, %v260
        %264 = vset.pattern.permute.xlu0 0
        %265 = vperm.xlu0 %264, %v239
        %v266 = vpop.permute.xlu0 %265
        %v268 = vunpack.c.l.s4 839922192
        %v269 = vunpack.c.0.s8 %v268
        %v270 = vlaneseq
        %v271 = vshrl.u32 %v270, 7
        %v272 = vsub.s32 %v269, %v271
        %v273 = vrot.slane %v266, %v272
        %v275 = vadd.f32 %v262, %v273
        %276 = vst [vmem:[%s186] sm:$0xff] %v275
        %s277 = sand.u32 %s96, 1
        %s278 = scalar_lea.sflag [#allocation4], %s277
        %s279 = sand.u32 %s96, 1
        %s280 = smul.addr %s279, 8
        %s281 = scalar_lea.vmem [#allocation5], %s280
        // Predicated region
        $region37: #{tpu_custom_call.1} parent=31 // pred_check
          %p282 = pneg %p106
        $region38: #{tpu_custom_call.1} parent=31 // pred_check_branch
          %284 = sbr.rel (%p282) target = $region40
        $region39: #{tpu_custom_call.1} parent=31 // pred_region
          %s286 = ssub.s32 128, 128
          %287 = vsyncadd %s278, %s286
          %s288 = smul.addr %s20, 2
          %s289 = smul.addr %s288, 64
          %s290 = scalar_lea.hbm %s3, %s289
          %s292 = sshll.u32 %s281, 4
          %s293 = int_to_ptr.vmem [resolvable:$true] %s292
          %295 = dma.vmem_to_hbm [thread:$0]  %s293, 128, %s290, %s278
        $region40: #{tpu_custom_call.1} parent=31 // pred_fallthru
          _
      $region32: #{tpu_custom_call.1} parent=5 // pred_fallthru
        _
      %p296 = scmp.le.s32.totalorder 2, %s15
      // Predicated region
      $region41: #{tpu_custom_call.1} parent=5 // pred_check
        %p297 = pneg %p296
      $region42: #{tpu_custom_call.1} parent=5 // pred_check_branch
        %299 = sbr.rel (%p297) target = $region44
      $region43: #{tpu_custom_call.1} parent=5 // pred_region
        %s300 = ssub.s32 %s15, 2
        // Predicated region
        $region45: #{tpu_custom_call.1} parent=43 // pred_check
          %p301 = pneg %p112
        $region46: #{tpu_custom_call.1} parent=43 // pred_check_branch
          %303 = sbr.rel (%p301) target = $region48
        $region47: #{tpu_custom_call.1} parent=43 // pred_region
          %s304 = sand.u32 %s97, 1
          %s305 = scalar_lea.sflag [#allocation4], %s304
          %s306 = sand.u32 %s97, 1
          %s307 = smul.addr %s306, 8
          %s308 = scalar_lea.vmem [#allocation5], %s307
          %309 = dma.done %s305, 128
        $region48: #{tpu_custom_call.1} parent=43 // pred_fallthru
          _
      $region44: #{tpu_custom_call.1} parent=5 // pred_fallthru
        _
    $region6: #{tpu_custom_call.1} parent=1 // loop_footer
      %s19 = sadd.s32 1, %s15
    $region7: #{tpu_custom_call.1} parent=1 // loop_footer_branch
      %14 = sbr.rel target = $region3
    $region8: #{tpu_custom_call.1} parent=1 // loop_exit
      _
    %310 = vsyncpa [#allocation3], 1
    %s311 = scalar_lea.sflag [#allocation3], 1
    %312 = vsyncpa %s311, 1
    %313 = vsyncpa [#allocation4], 1
    %s314 = scalar_lea.sflag [#allocation4], 1
    %315 = vsyncpa %s314, 1

</llo_original>
